<compile_context>
chip_gen: v5e
topology: v5e:2x2
jax: 0.10.0
libtpu: 0.0.40
codegen_flags: <defaults>
</compile_context>

<pallas_src>
import functools

import jax
import jax.numpy as jnp
from jax.experimental import pallas as pl
from jax.experimental.pallas import tpu as pltpu

SMOOTHING = 0.1


def _ls_loss_kernel(logits_ref, label_ref, out_ref, *, n_rows, smoothing):
    # logits_ref: (T, C) native dtype in VMEM
    # label_ref : (T, 1) int32      in VMEM
    # out_ref   : (T, 1) float32    in VMEM (per-row loss; padded rows -> 0)
    i = pl.program_id(0)
    x = logits_ref[...].astype(jnp.float32)                      # (T, C)
    t, c = x.shape
    lbl = label_ref[...]                                         # (T, 1)

    # log_softmax pieces along the class (lane) axis.
    m = jnp.max(x, axis=-1, keepdims=True)
    shifted = x - m
    lse = jnp.log(jnp.sum(jnp.exp(shifted), axis=-1, keepdims=True))

    # shifted[row, label[row]] via a masked lane reduce (no onehot materialized).
    col = jax.lax.broadcasted_iota(jnp.int32, (t, c), 1)
    sel = jnp.sum(jnp.where(col == lbl, shifted, 0.0), axis=-1, keepdims=True)
    ssum = jnp.sum(shifted, axis=-1, keepdims=True)

    # -sum(logs * smoothed) with smoothed = onehot*(1-s) + s/C (sums to 1):
    per_row = lse - ((1.0 - smoothing) * sel + (smoothing / c) * ssum)  # (T, 1)

    # Mask tail-padded rows (contents of the OOB part of the last tile are
    # undefined) so they don't pollute the mean.
    row = i * t + jax.lax.broadcasted_iota(jnp.int32, (t, 1), 0)
    out_ref[...] = jnp.where(row < n_rows, per_row, 0.0)


def _auto_tile_n(n, c, itemsize):
    # Keep double-buffered native input tiles plus f32 compute temporaries
    # comfortably inside the 32 MiB scoped-VMEM default (safe on v5e/v6e and
    # the 64 MiB-physical v7x): budget ~2 MiB of f32-equivalent per row tile.
    per_row_bytes = max(1, c) * max(int(itemsize), 4)
    t = (2 * 1024 * 1024) // per_row_bytes
    t = min(t, 512)
    t = min(t, ((n + 7) // 8) * 8)
    t = max(8, (t // 8) * 8)
    return int(t)


def label_smoothing_loss(logits, label, *, smoothing=SMOOTHING,
                         reduction="mean", tile_n=None):
    """logits: (N, C) float (any dtype); label: (N,) int class indices."""
    n, c = logits.shape
    itemsize = jnp.dtype(logits.dtype).itemsize
    if tile_n is None:
        tile_n = _auto_tile_n(n, c, itemsize)
    tile_n = max(8, (int(tile_n) // 8) * 8)

    num_tiles = pl.cdiv(n, tile_n)
    n_pad = num_tiles * tile_n
    label2d = label.reshape(n, 1).astype(jnp.int32)

    kernel = functools.partial(_ls_loss_kernel, n_rows=n, smoothing=float(smoothing))

    per_row = pl.pallas_call(
        kernel,
        out_shape=jax.ShapeDtypeStruct((n_pad, 1), jnp.float32),
        grid=(num_tiles,),
        in_specs=[
            pl.BlockSpec((tile_n, c), lambda i: (i, 0)),   # logits row tile
            pl.BlockSpec((tile_n, 1), lambda i: (i, 0)),   # labels row tile
        ],
        out_specs=pl.BlockSpec((tile_n, 1), lambda i: (i, 0)),
        compiler_params=pltpu.CompilerParams(
            dimension_semantics=("parallel",),
            vmem_limit_bytes=32 * 1024 * 1024,
        ),
        cost_estimate=pl.CostEstimate(
            flops=int(6 * n * c),
            transcendentals=int(n * c),
            bytes_accessed=int(n * c * itemsize + n * 4 + n_pad * 4),
        ),
    )(logits, label2d)

    # Tiny final reduction in XLA; padded rows are already zeroed in-kernel.
    total = jnp.sum(per_row)
    if reduction == "mean":
        return total / n
    if reduction == "sum":
        return total
    return per_row[:n, 0]


def _reference(logits, label, smoothing=SMOOTHING):
    n, c = logits.shape
    onehot = jax.nn.one_hot(label, c, dtype=jnp.float32)
    lbl = onehot * (1.0 - smoothing) + smoothing / c
    lbl = lbl / jnp.sum(lbl, axis=-1, keepdims=True)
    logs = jax.nn.log_softmax(logits.astype(jnp.float32), axis=-1)
    return jnp.mean(-jnp.sum(logs * lbl, axis=-1))


if __name__ == "__main__":
    key = jax.random.PRNGKey(0)
    k1, k2 = jax.random.split(key)
    N, C = 40, 128                     # N not a multiple of tile_n -> exercises tail mask
    logits = jax.random.normal(k1, (N, C), dtype=jnp.float32)
    label = jax.random.randint(k2, (N,), 0, C, dtype=jnp.int32)

    # f32 path, multi-tile grid (tile_n=16 -> grid of 3, last tile partial).
    loss = label_smoothing_loss(logits, label, tile_n=16)
    jax.block_until_ready(loss)
    ref = _reference(logits, label)
    assert jnp.allclose(loss, ref, atol=1e-5, rtol=1e-5), (loss, ref)

    # bf16 pass-through (no wrapper upcast; in-kernel f32 math), auto tile size.
    logits_bf16 = logits.astype(jnp.bfloat16)
    loss_bf16 = label_smoothing_loss(logits_bf16, label)
    jax.block_until_ready(loss_bf16)
    ref_bf16 = _reference(logits_bf16.astype(jnp.float32), label)
    assert jnp.allclose(loss_bf16, ref_bf16, atol=5e-2, rtol=5e-2), (loss_bf16, ref_bf16)

    print("KERNEL_OK")
</pallas_src>

<mosaic_0001>
module attributes {stable_mosaic.version = 11 : i64} {
  func.func @_ls_loss_kernel(%arg0: i32, %arg1: memref<16x128xf32, #tpu.memory_space<vmem>>, %arg2: memref<16x1xi32, #tpu.memory_space<vmem>>, %arg3: memref<16x1xf32, #tpu.memory_space<vmem>>) attributes {dimension_semantics = [#tpu.dimension_semantics<parallel>], iteration_bounds = array<i64: 3>, scalar_prefetch = 0 : i64, scratch_operands = 0 : i64, tpu.core_type = #tpu.core_type<tc>, window_params = [{transform_indices = @transform_0, window_bounds = array<i64: 16, 128>}, {transform_indices = @transform_1, window_bounds = array<i64: 16, 1>}, {transform_indices = @transform_2, window_bounds = array<i64: 16, 1>}]} {
    %c0 = arith.constant 0 : index
    %c0_0 = arith.constant 0 : index
    %0 = vector.load %arg1[%c0, %c0_0] : memref<16x128xf32, #tpu.memory_space<vmem>>, vector<16x128xf32>
    %c0_1 = arith.constant 0 : index
    %c0_2 = arith.constant 0 : index
    %1 = vector.load %arg2[%c0_1, %c0_2] : memref<16x1xi32, #tpu.memory_space<vmem>>, vector<16x1xi32>
    %cst = arith.constant dense<0xFF800000> : vector<16xf32>
    %2 = vector.multi_reduction <maximumf>, %0, %cst [1] : vector<16x128xf32> to vector<16xf32>
    %3 = vector.shape_cast %2 : vector<16xf32> to vector<16x1xf32>
    %4 = vector.broadcast %3 : vector<16x1xf32> to vector<16x128xf32>
    %5 = arith.subf %0, %4 : vector<16x128xf32>
    %6 = math.exp %5 : vector<16x128xf32>
    %cst_3 = arith.constant dense<0.000000e+00> : vector<16xf32>
    %7 = vector.multi_reduction <add>, %6, %cst_3 [1] : vector<16x128xf32> to vector<16xf32>
    %8 = vector.shape_cast %7 : vector<16xf32> to vector<16x1xf32>
    %9 = math.log %8 : vector<16x1xf32>
    %10 = tpu.iota {dimensions = array<i32: 1>} : vector<16x128xi32>
    %11 = vector.broadcast %1 : vector<16x1xi32> to vector<16x128xi32>
    %12 = arith.cmpi eq, %10, %11 : vector<16x128xi32>
    %cst_4 = arith.constant 0.000000e+00 : f32
    %13 = vector.broadcast %cst_4 : f32 to vector<16x128xf32>
    %14 = arith.select %12, %5, %13 : vector<16x128xi1>, vector<16x128xf32>
    %cst_5 = arith.constant dense<0.000000e+00> : vector<16xf32>
    %15 = vector.multi_reduction <add>, %14, %cst_5 [1] : vector<16x128xf32> to vector<16xf32>
    %16 = vector.shape_cast %15 : vector<16xf32> to vector<16x1xf32>
    %cst_6 = arith.constant dense<0.000000e+00> : vector<16xf32>
    %17 = vector.multi_reduction <add>, %5, %cst_6 [1] : vector<16x128xf32> to vector<16xf32>
    %18 = vector.shape_cast %17 : vector<16xf32> to vector<16x1xf32>
    %cst_7 = arith.constant 0.899999976 : f32
    %19 = vector.broadcast %cst_7 : f32 to vector<16x1xf32>
    %20 = arith.mulf %19, %16 : vector<16x1xf32>
    %cst_8 = arith.constant 7.812500e-04 : f32
    %21 = vector.broadcast %cst_8 : f32 to vector<16x1xf32>
    %22 = arith.mulf %21, %18 : vector<16x1xf32>
    %23 = arith.addf %20, %22 : vector<16x1xf32>
    %24 = arith.subf %9, %23 : vector<16x1xf32>
    %c16_i32 = arith.constant 16 : i32
    %25 = arith.muli %arg0, %c16_i32 : i32
    %26 = tpu.iota {dimensions = array<i32: 0>} : vector<16x1xi32>
    %27 = vector.broadcast %25 : i32 to vector<16x1xi32>
    %28 = arith.addi %27, %26 : vector<16x1xi32>
    %c40_i32 = arith.constant 40 : i32
    %29 = vector.broadcast %c40_i32 : i32 to vector<16x1xi32>
    %30 = arith.cmpi slt, %28, %29 : vector<16x1xi32>
    %cst_9 = arith.constant 0.000000e+00 : f32
    %31 = vector.broadcast %cst_9 : f32 to vector<16x1xf32>
    %32 = arith.select %30, %24, %31 : vector<16x1xi1>, vector<16x1xf32>
    %c0_10 = arith.constant 0 : index
    %c0_11 = arith.constant 0 : index
    %33 = vector.load %arg3[%c0_10, %c0_11] : memref<16x1xf32, #tpu.memory_space<vmem>>, vector<16x1xf32>
    tpu.vector_store %arg3[%c0_10, %c0_11], %32 {strides = array<i32>} : memref<16x1xf32, #tpu.memory_space<vmem>>, vector<16x1xf32>,
    return
  }
  func.func @transform_0(%arg0: i32) -> (i32, i32) {
    %c0_i32 = arith.constant 0 : i32
    %c0_i32_0 = arith.constant 0 : i32
    return %arg0, %c0_i32 : i32, i32
  }
  func.func @transform_1(%arg0: i32) -> (i32, i32) {
    %c0_i32 = arith.constant 0 : i32
    %c0_i32_0 = arith.constant 0 : i32
    return %arg0, %c0_i32 : i32, i32
  }
  func.func @transform_2(%arg0: i32) -> (i32, i32) {
    %c0_i32 = arith.constant 0 : i32
    %c0_i32_0 = arith.constant 0 : i32
    return %arg0, %c0_i32 : i32, i32
  }
}

</mosaic_0001>

<llo_original>
// kernel: tpu_custom_call.1
$region0: #{tpu_custom_call.1}
  #allocation0 [shape = 'u32[]', space=smem, size = 0x4, offset = 0x4, fixed_abs, tag = 'smem constant byte address 0x4 - core index']
  #allocation1 [shape = 'u32[72,128]{1,0:T(1,128)}', space=vmem, size = 0x9000, scoped, tag = 'internal scratch']
  %s0 = inlined_call_operand.vmem [shape: f32[40,128], index: 0, kind: input, shape index: {}]
  %s1 = inlined_call_operand.vmem [shape: s32[40,1], index: 1, kind: input, shape index: {}]
  %s2 = inlined_call_operand.vmem [shape: f32[48,1], index: 2, kind: output, shape index: {}]
  %s3 = sld [smem:[#allocation0]]
  $region41: #{tpu_custom_call.1} parent=0
    _
  %s5 = ssub.s32 1, %s3
  %s6 = scalar_select 0, %s5, %s3
  loop: start=0, step=1, limit=5
  $region2: #{tpu_custom_call.1} parent=0 // loop_pre_header
    _
  $region3: #{tpu_custom_call.1} parent=0 // loop_header
    %s8 = sphi 0, %s12
    %p9 = scmp.ge.s32.totalorder %s8, 5
    %s18 = sphi 0, %s20
    %s21 = sphi 0, %s18
    %s22 = sphi 0, %s21
    %s38 = sphi 0, %s22
    %s44 = sphi 0, %s46
    %s47 = sphi 0, %s44
    %s48 = sphi 0, %s47
    %s64 = sphi 0, %s48
    %s70 = sphi 0, %s72
    %s73 = sphi 0, %s70
    %s74 = sphi 0, %s73
    %s90 = sphi 0, %s74
  $region4: #{tpu_custom_call.1} parent=0 // loop_header_branch
    %11 = sbr.rel (%p9) target = $region8
  $region5: #{tpu_custom_call.1} parent=0 // loop_body
    %s13 = ssub.s32 %s8, 1
    %s14 = ssub.s32 %s8, 2
    %s15 = sadd.s32 %s8, 1
    %s16 = ssub.s32 %s8, %s15
    %p17 = scmp.eq.s32.totalorder %s16, 0
    %s19 = sadd.s32 %s18, 1
    %s20 = scalar_select %p17, %s18, %s19
    %p23 = pneg %p17
    %p24 = scmp.eq.s32.totalorder %s8, 2
    %p25 = por %p23, %p24
    %p26 = scmp.ne.s32.totalorder %s18, %s21
    %p27 = scmp.eq.s32.totalorder %s8, 0
    %p28 = por %p26, %p27
    %p29 = scmp.ne.s32.totalorder %s18, %s21
    %p30 = scmp.eq.s32.totalorder %s13, 2
    %p31 = por %p29, %p30
    %p32 = scmp.ne.s32.totalorder %s21, %s22
    %p33 = scmp.eq.s32.totalorder %s13, 0
    %p34 = por %p32, %p33
    %p35 = scmp.ne.s32.totalorder %s21, %s22
    %p36 = scmp.eq.s32.totalorder %s14, 2
    %p37 = por %p35, %p36
    %p39 = scmp.ne.s32.totalorder %s22, %s38
    %p40 = scmp.eq.s32.totalorder %s14, 0
    %p41 = por %p39, %p40
    %s42 = ssub.s32 %s8, %s15
    %p43 = scmp.eq.s32.totalorder %s42, 0
    %s45 = sadd.s32 %s44, 1
    %s46 = scalar_select %p43, %s44, %s45
    %p49 = pneg %p43
    %p50 = scmp.eq.s32.totalorder %s8, 2
    %p51 = por %p49, %p50
    %p52 = scmp.ne.s32.totalorder %s44, %s47
    %p53 = scmp.eq.s32.totalorder %s8, 0
    %p54 = por %p52, %p53
    %p55 = scmp.ne.s32.totalorder %s44, %s47
    %p56 = scmp.eq.s32.totalorder %s13, 2
    %p57 = por %p55, %p56
    %p58 = scmp.ne.s32.totalorder %s47, %s48
    %p59 = scmp.eq.s32.totalorder %s13, 0
    %p60 = por %p58, %p59
    %p61 = scmp.ne.s32.totalorder %s47, %s48
    %p62 = scmp.eq.s32.totalorder %s14, 2
    %p63 = por %p61, %p62
    %p65 = scmp.ne.s32.totalorder %s48, %s64
    %p66 = scmp.eq.s32.totalorder %s14, 0
    %p67 = por %p65, %p66
    %s68 = ssub.s32 %s8, %s15
    %p69 = scmp.eq.s32.totalorder %s68, 0
    %s71 = sadd.s32 %s70, 1
    %s72 = scalar_select %p69, %s70, %s71
    %p75 = pneg %p69
    %p76 = scmp.eq.s32.totalorder %s8, 2
    %p77 = por %p75, %p76
    %p78 = scmp.ne.s32.totalorder %s70, %s73
    %p79 = scmp.eq.s32.totalorder %s8, 0
    %p80 = por %p78, %p79
    %p81 = scmp.ne.s32.totalorder %s70, %s73
    %p82 = scmp.eq.s32.totalorder %s13, 2
    %p83 = por %p81, %p82
    %p84 = scmp.ne.s32.totalorder %s73, %s74
    %p85 = scmp.eq.s32.totalorder %s13, 0
    %p86 = por %p84, %p85
    %p87 = scmp.ne.s32.totalorder %s73, %s74
    %p88 = scmp.eq.s32.totalorder %s14, 2
    %p89 = por %p87, %p88
    %p91 = scmp.ne.s32.totalorder %s74, %s90
    %p92 = scmp.eq.s32.totalorder %s14, 0
    %p93 = por %p91, %p92
    %p94 = scmp.le.s32.totalorder 1, %s8
    %p95 = scmp.lt.s32.totalorder %s8, 4
    %p96 = pnand %p94, %p95
    %p97 = pneg %p96
    // Predicated region
    $region9: #{tpu_custom_call.1} parent=5 // pred_check
      _
    $region10: #{tpu_custom_call.1} parent=5 // pred_check_branch
      %99 = sbr.rel (%p96) target = $region12
    $region11: #{tpu_custom_call.1} parent=5 // pred_region
      %s100 = ssub.s32 %s8, 1
    $region12: #{tpu_custom_call.1} parent=5 // pred_fallthru
      _
    %p101 = scmp.lt.s32.totalorder %s8, 3
    // Predicated region
    $region13: #{tpu_custom_call.1} parent=5 // pred_check
      %p102 = pneg %p101
    $region14: #{tpu_custom_call.1} parent=5 // pred_check_branch
      %104 = sbr.rel (%p102) target = $region16
    $region15: #{tpu_custom_call.1} parent=5 // pred_region
      // Predicated region
      $region17: #{tpu_custom_call.1} parent=15 // pred_check
        %p105 = pneg %p28
      $region18: #{tpu_custom_call.1} parent=15 // pred_check_branch
        %107 = sbr.rel (%p105) target = $region20
      $region19: #{tpu_custom_call.1} parent=15 // pred_region
        %s108 = smul.u32 2, %s8
        %s109 = ssub.s32 5, %s108
        %p110 = scmp.lt.s32.totalorder %s109, 2
        %s111 = scalar_select %p110, %s109, 2
        %s112 = smul.u32 8, %s111
        %p113 = scmp.lt.s32.totalorder %s108, 4
        %s114 = scalar_select %p113, %s108, 4
        %s115 = smul.addr %s114, 8
        %s116 = scalar_lea.vmem %s0, %s115
        %s117 = smul.u32 2, %s8
        %s118 = ssub.s32 5, %s117
        %p119 = scmp.lt.s32.totalorder %s118, 2
        %s120 = scalar_select %p119, %s118, 2
        %s121 = smul.u32 8, %s120
      $region20: #{tpu_custom_call.1} parent=15 // pred_fallthru
        _
      // Predicated region
      $region21: #{tpu_custom_call.1} parent=15 // pred_check
        %p122 = pneg %p54
      $region22: #{tpu_custom_call.1} parent=15 // pred_check_branch
        %124 = sbr.rel (%p122) target = $region24
      $region23: #{tpu_custom_call.1} parent=15 // pred_region
        %s125 = smul.u32 2, %s8
        %s126 = ssub.s32 5, %s125
        %p127 = scmp.lt.s32.totalorder %s126, 2
        %s128 = scalar_select %p127, %s126, 2
        %s129 = smul.u32 8, %s128
        %p130 = scmp.lt.s32.totalorder %s125, 4
        %s131 = scalar_select %p130, %s125, 4
        %s132 = smul.addr %s131, 8
        %s133 = scalar_lea.vmem %s1, %s132
        %s134 = smul.u32 2, %s8
        %s135 = ssub.s32 5, %s134
        %p136 = scmp.lt.s32.totalorder %s135, 2
        %s137 = scalar_select %p136, %s135, 2
        %s138 = smul.u32 8, %s137
      $region24: #{tpu_custom_call.1} parent=15 // pred_fallthru
        _
    $region16: #{tpu_custom_call.1} parent=5 // pred_fallthru
      _
    %p139 = scmp.le.s32.totalorder 1, %s8
    %p140 = scmp.lt.s32.totalorder %s8, 4
    %p141 = pnand %p139, %p140
    %p142 = pneg %p141
    // Predicated region
    $region25: #{tpu_custom_call.1} parent=5 // pred_check
      _
    $region26: #{tpu_custom_call.1} parent=5 // pred_check_branch
      %144 = sbr.rel (%p141) target = $region28
    $region27: #{tpu_custom_call.1} parent=5 // pred_region
      %s145 = ssub.s32 %s8, 1
      %s146 = smul.u32 2, %s13
      %s147 = ssub.s32 5, %s146
      %p148 = scmp.lt.s32.totalorder %s147, 2
      %s149 = scalar_select %p148, %s147, 2
      %s150 = smul.u32 8, %s149
      %p151 = scmp.lt.s32.totalorder %s146, 4
      %s152 = scalar_select %p151, %s146, 4
      %s153 = smul.addr %s152, 8
      %s154 = scalar_lea.vmem %s0, %s153
      %p155 = pneg %p34
      %p156 = pneg %p31
      %s157 = smul.u32 2, %s13
      %s158 = ssub.s32 5, %s157
      %p159 = scmp.lt.s32.totalorder %s158, 2
      %s160 = scalar_select %p159, %s158, 2
      %s161 = smul.u32 8, %s160
      %p162 = scmp.lt.s32.totalorder %s157, 4
      %s163 = scalar_select %p162, %s157, 4
      %s164 = smul.addr %s163, 8
      %s165 = scalar_lea.vmem %s1, %s164
      %p166 = pneg %p60
      %p167 = pneg %p57
      %p168 = pneg %p86
      %p169 = pneg %p83
      %s170 = smul.u32 2, %s13
      %p171 = scmp.lt.s32.totalorder %s170, 5
      %s172 = scalar_select %p171, %s170, 5
      %s173 = smul.addr %s172, 8
      %s174 = scalar_lea.vmem %s2, %s173
      %s175 = smul.u32 2, %s13
      %s176 = ssub.s32 5, %s175
      %p177 = scmp.lt.s32.totalorder %s176, 2
      %s178 = scalar_select %p177, %s176, 2
      %s179 = smul.u32 8, %s178
      %p180 = scmp.lt.s32.totalorder %s175, 4
      %s181 = scalar_select %p180, %s175, 4
      %s182 = smul.addr %s181, 8
      %s183 = scalar_lea.vmem %s0, %s182
      %s184 = smul.u32 2, %s13
      %s185 = ssub.s32 5, %s184
      %p186 = scmp.lt.s32.totalorder %s185, 2
      %s187 = scalar_select %p186, %s185, 2
      %s188 = smul.u32 8, %s187
      %s189 = smul.u32 2, %s13
      %s190 = ssub.s32 5, %s189
      %p191 = scmp.lt.s32.totalorder %s190, 2
      %s192 = scalar_select %p191, %s190, 2
      %s193 = smul.u32 8, %s192
      %p194 = scmp.lt.s32.totalorder %s189, 4
      %s195 = scalar_select %p194, %s189, 4
      %s196 = smul.addr %s195, 8
      %s197 = scalar_lea.vmem %s1, %s196
      %s198 = smul.u32 2, %s13
      %s199 = ssub.s32 5, %s198
      %p200 = scmp.lt.s32.totalorder %s199, 2
      %s201 = scalar_select %p200, %s199, 2
      %s202 = smul.u32 8, %s201
      %s203 = smul.u32 2, %s13
      %p204 = scmp.lt.s32.totalorder %s203, 5
      %s205 = scalar_select %p204, %s203, 5
      %s206 = smul.addr %s205, 8
      %s207 = scalar_lea.vmem %s2, %s206
      %s208 = smul.u32 2, %s13
      %v209 = vld [vmem:[%s183] sm:$0xff]
      %v210 = vld [vmem:[%s183 + $0x8] sm:$0xff]
      %v211 = vld [vmem:[%s197] sm:$0xff]
      %v212 = vld [vmem:[%s197 + $0x8] sm:$0xff]
      %213 = vmax.xlane.f32.xlu0 %v209
      %v214 = vpop.xlane.xlu0 %213
      %215 = vmax.xlane.f32.xlu0 %v210
      %v216 = vpop.xlane.xlu0 %215
      %v217 = vsub.f32 %v209, %v214
      %v218 = vsub.f32 %v210, %v216
      %v219 = vmul.f32 %v217, 1.442695
      %v220 = vpow.pop %v219
      %v221 = vmul.f32 %v218, 1.442695
      %v222 = vpow.pop %v221
      %223 = vadd.xlane.f32.xlu0 %v220
      %v224 = vpop.xlane.xlu0 %223
      %225 = vadd.xlane.f32.xlu0 %v222
      %v226 = vpop.xlane.xlu0 %225
      %v227 = vlog2.pop %v224
      %v228 = vmul.f32 %v227, 0.6931472
      %v229 = vlog2.pop %v226
      %v230 = vmul.f32 %v229, 0.6931472
      %v231 = vlaneseq
      %v232 = vand.u32 %v231, 127
      %233 = vset.pattern.permute.xlu0 0
      %234 = vperm.xlu0 %233, %v211
      %v235 = vpop.permute.xlu0 %234
      %236 = vset.pattern.permute.xlu0 0
      %237 = vperm.xlu0 %236, %v212
      %v238 = vpop.permute.xlu0 %237
      %vm239 = vcmp.eq.s32.totalorder %v232, %v235
      %vm240 = vcmp.eq.s32.totalorder %v232, %v238
      %v241 = vsel %vm239, %v217, 0.0
      %v242 = vsel %vm240, %v218, 0.0
      %243 = vadd.xlane.f32.xlu0 %v241
      %v244 = vpop.xlane.xlu0 %243
      %245 = vadd.xlane.f32.xlu0 %v242
      %v246 = vpop.xlane.xlu0 %245
      %247 = vadd.xlane.f32.xlu0 %v217
      %v248 = vpop.xlane.xlu0 %247
      %249 = vadd.xlane.f32.xlu0 %v218
      %v250 = vpop.xlane.xlu0 %249
      %v251 = vmul.f32 %v244, 0.9
      %v252 = vmul.f32 %v246, 0.9
      %v253 = vmul.f32 %v248, 0.00078125
      %v254 = vmul.f32 %v250, 0.00078125
      %v255 = vadd.f32 %v251, %v253
      %v256 = vadd.f32 %v252, %v254
      %v257 = vsub.f32 %v228, %v255
      %v258 = vsub.f32 %v230, %v256
      %s259 = smul.u32 %s13, 16
      %v260 = vlaneseq
      %v261 = vshrl.u32 %v260, 7
      %v262 = vadd.s32 %v261, 8
      %v263 = vstv %s259
      %v264 = vadd.s32 %v263, %v261
      %v265 = vadd.s32 %v263, %v262
      %vm266 = vcmp.lt.s32.totalorder %v264, 40
      %vm267 = vcmp.lt.s32.totalorder %v265, 40
      %v268 = vsel %vm266, %v257, 0.0
      %v269 = vsel %vm267, %v258, 0.0
      %vm270 = vcmask 7168
      %271 = vst.msk [vmem:[%s207] sm:$0xff] %vm270, %v268
      %272 = vst.msk [vmem:[%s207 + $0x8] sm:$0xff] %vm270, %v269
      %s273 = smul.u32 2, %s13
      %p274 = scmp.lt.s32.totalorder %s273, 5
      %s275 = scalar_select %p274, %s273, 5
      %s276 = smul.addr %s275, 8
      %s277 = scalar_lea.vmem %s2, %s276
      // Predicated region
      $region29: #{tpu_custom_call.1} parent=27 // pred_check
        %p278 = pneg %p83
      $region30: #{tpu_custom_call.1} parent=27 // pred_check_branch
        %280 = sbr.rel (%p278) target = $region32
      $region31: #{tpu_custom_call.1} parent=27 // pred_region
        %s281 = smul.u32 2, %s13
      $region32: #{tpu_custom_call.1} parent=27 // pred_fallthru
        _
    $region28: #{tpu_custom_call.1} parent=5 // pred_fallthru
      _
    %p282 = scmp.le.s32.totalorder 2, %s8
    // Predicated region
    $region33: #{tpu_custom_call.1} parent=5 // pred_check
      %p283 = pneg %p282
    $region34: #{tpu_custom_call.1} parent=5 // pred_check_branch
      %285 = sbr.rel (%p283) target = $region36
    $region35: #{tpu_custom_call.1} parent=5 // pred_region
      %s286 = ssub.s32 %s8, 2
      // Predicated region
      $region37: #{tpu_custom_call.1} parent=35 // pred_check
        %p287 = pneg %p89
      $region38: #{tpu_custom_call.1} parent=35 // pred_check_branch
        %289 = sbr.rel (%p287) target = $region40
      $region39: #{tpu_custom_call.1} parent=35 // pred_region
        %s290 = smul.u32 2, %s14
        %p291 = scmp.lt.s32.totalorder %s290, 5
        %s292 = scalar_select %p291, %s290, 5
        %s293 = smul.addr %s292, 8
        %s294 = scalar_lea.vmem %s2, %s293
      $region40: #{tpu_custom_call.1} parent=35 // pred_fallthru
        _
    $region36: #{tpu_custom_call.1} parent=5 // pred_fallthru
      _
  $region6: #{tpu_custom_call.1} parent=0 // loop_footer
    %s12 = sadd.s32 1, %s8
  $region7: #{tpu_custom_call.1} parent=0 // loop_footer_branch
    %7 = sbr.rel target = $region3
  $region8: #{tpu_custom_call.1} parent=0 // loop_exit
    _

</llo_original>
